<compile_context>
chip_gen: v7x
topology: tpu7x:2x2x1
jax: 0.10.0
libtpu: 0.0.40
codegen_flags: <defaults>
</compile_context>

<pallas_src>
import functools

import jax
import jax.numpy as jnp
from jax.experimental import pallas as pl
from jax.experimental.pallas import tpu as pltpu

DT = jnp.bfloat16     # storage / matmul-operand dtype
ACC = jnp.float32     # accumulator / epilogue dtype

_VMEM_LIMIT = 40 * 1024 * 1024          # < 64 MiB (v7x per-TC physical)
_SCRATCH_BUDGET = 16 * 1024 * 1024      # im2col scratch budget per step


# ----------------------------------------------------------------------------
# Tile pickers
# ----------------------------------------------------------------------------
def _pick_row_tile(h_out, wp, k_rows, max_th=64, budget=_SCRATCH_BUDGET):
    """Row tile for the conv kernel.

    Largest divisor of h_out (<= max_th, or h_out itself when small) such that
    the bf16 im2col scratch (k_rows x TH*wp) fits the VMEM budget.
    """
    if h_out <= max_th:
        cands = [h_out] + [t for t in range(h_out - 1, 0, -1) if h_out % t == 0]
    else:
        cands = [t for t in range(max_th, 0, -1) if h_out % t == 0]
    for t in cands:
        if k_rows * t * wp * 2 <= budget:
            return t
    return cands[-1]


def _pick_pool_tile(ho, cap=128):
    """Output-row tile for the pool kernel: multiple of 8 (layout rule) unless
    it covers the whole output height."""
    if ho <= cap:
        return ho
    for t in range(cap - cap % 8, 7, -8):
        if ho % t == 0:
            return t
    return ho


# ----------------------------------------------------------------------------
# Convolution kernel (one (batch, row-block) grid step)
# ----------------------------------------------------------------------------
def _conv_kernel(x_ref, w_ref, b_ref, o_ref, rhs_ref, *,
                 KH, KW, Wp, relu_in, relu_out):
    """x_ref : (Cin, LW)            bf16 flat haloed row-window (zero padded)
       w_ref : (Cout, KH*KW*Cin)    bf16 fully folded weights
       b_ref : (Cout, 1)            f32  bias
       o_ref : (Cout, TH*Wp)        bf16 flat output rows (junk right columns)
       rhs_ref:(KH*KW*Cin, TH*Wp)   bf16 scratch: full im2col slab
    """
    cin = x_ref.shape[0]
    cout, nw = o_ref.shape                      # nw = TH * Wp

    xv = x_ref[...]
    if relu_in:
        xv = jnp.maximum(xv, 0)                 # relu(0) = 0 keeps pad semantics

    # im2col: stack every (kh, kw) lane-shifted slice along K (static offsets).
    for kh in range(KH):
        for kw in range(KW):
            tap = kh * KW + kw
            off = kh * Wp + kw                  # static flat shift
            rhs_ref[tap * cin:(tap + 1) * cin, :] = xv[:, off:off + nw]

    # Single MXU matmul, K = KH*KW*Cin; accumulation stays inside the MXU.
    acc = jnp.dot(w_ref[...], rhs_ref[...], preferred_element_type=ACC)
    acc = acc + b_ref[...]
    if relu_out:
        acc = jnp.maximum(acc, 0.0)
    o_ref[...] = acc.astype(o_ref.dtype)


def conv2d(x, w, b, *, padding, relu_in=False, relu_out=False):
    """Stride-1 Conv2d.  x: (N, Cin, H, W);  w: (Cout, Cin, KH, KW);  b: (Cout,).
    Returns (N, Cout, H_out, W_out) in bf16."""
    N, Cin, H, W = x.shape
    Cout, Cin_w, KH, KW = w.shape
    assert Cin == Cin_w
    x = x.astype(DT)
    w = w.astype(DT)

    # Pad Cin up to a multiple of 8 (sublane alignment); extra channels are zero.
    cpad = (-Cin) % 8
    if cpad:
        x = jnp.pad(x, ((0, 0), (0, cpad), (0, 0), (0, 0)))
        w = jnp.pad(w, ((0, 0), (0, cpad), (0, 0), (0, 0)))
        Cin += cpad

    if padding == "same":
        ph, pw = KH // 2, KW // 2
    else:                                        # 'valid'
        ph = pw = 0
    H_out = H + 2 * ph - KH + 1
    W_out = W + 2 * pw - KW + 1
    Wp = W + 2 * pw
    K = KH * KW * Cin

    TH = _pick_row_tile(H_out, Wp, K)
    HB = H_out // TH
    TH_in = TH + KH - 1
    NW = TH * Wp
    LW = TH_in * Wp + (KW - 1)

    # Flat haloed row-windows, built once in XLA (zero padded in H and W,
    # KW-1 trailing zeros so every static in-kernel slice stays in bounds).
    xp = jnp.pad(x, ((0, 0), (0, 0), (ph, ph), (pw, pw)))
    xw = jnp.stack([xp[:, :, i * TH:i * TH + TH_in, :] for i in range(HB)],
                   axis=1)
    xw = xw.reshape(N, HB, Cin, TH_in * Wp)
    if KW > 1:
        xw = jnp.pad(xw, ((0, 0), (0, 0), (0, 0), (0, KW - 1)))

    # Fully folded weights: (Cout, KH*KW*Cin), wf[o, (kh*KW+kw)*Cin + c] = w[o,c,kh,kw].
    wf = jnp.transpose(w, (0, 2, 3, 1)).reshape(Cout, K)
    bb = b.reshape(Cout, 1).astype(ACC)

    kernel = functools.partial(_conv_kernel, KH=KH, KW=KW, Wp=Wp,
                               relu_in=relu_in, relu_out=relu_out)
    out_flat = pl.pallas_call(
        kernel,
        out_shape=jax.ShapeDtypeStruct((N, HB, Cout, NW), DT),
        grid=(N, HB),
        in_specs=[
            pl.BlockSpec((None, None, Cin, LW), lambda n, hb: (n, hb, 0, 0)),
            pl.BlockSpec((Cout, K), lambda n, hb: (0, 0)),
            pl.BlockSpec((Cout, 1), lambda n, hb: (0, 0)),
        ],
        out_specs=pl.BlockSpec((None, None, Cout, NW),
                               lambda n, hb: (n, hb, 0, 0)),
        scratch_shapes=[pltpu.VMEM((K, NW), DT)],
        compiler_params=pltpu.CompilerParams(
            dimension_semantics=("parallel", "parallel"),
            vmem_limit_bytes=_VMEM_LIMIT),
    )(xw, wf, bb)

    # Un-flatten (drop junk right columns, merge row blocks) — fused XLA pass
    # (also fuses with the residual/BN epilogue and the next layer's windows).
    y = out_flat.reshape(N, HB, Cout, TH, Wp)[..., :W_out]
    y = jnp.transpose(y, (0, 2, 1, 3, 4)).reshape(N, Cout, H_out, W_out)
    return y


# ----------------------------------------------------------------------------
# AvgPool2d(kernel=2, stride=2) — blocked, per-channel double matmul
# ----------------------------------------------------------------------------
def _pool_kernel(x_ref, ah_ref, aw_ref, o_ref):
    C = o_ref.shape[0]
    ah = ah_ref[...]                             # (TP, 2*TP)  0.5 row-pair matrix
    aw = aw_ref[...]                             # (W, Wo)     0.5 col-pair matrix
    for c in range(C):
        t = jnp.dot(ah, x_ref[c].astype(ACC), preferred_element_type=ACC)
        o_ref[c] = jnp.dot(t, aw, preferred_element_type=ACC).astype(o_ref.dtype)


def avg_pool2(x):
    """x: (N, C, H, W) -> (N, C, H//2, W//2)."""
    N, C, H, W = x.shape
    Ho, Wo = H // 2, W // 2
    TP = _pick_pool_tile(Ho)
    HB = Ho // TP
    ah = jnp.where(jnp.arange(2 * TP)[None, :] // 2 == jnp.arange(TP)[:, None],
                   0.5, 0.0).astype(ACC)
    aw = jnp.where(jnp.arange(W)[:, None] // 2 == jnp.arange(Wo)[None, :],
                   0.5, 0.0).astype(ACC)
    return pl.pallas_call(
        _pool_kernel,
        out_shape=jax.ShapeDtypeStruct((N, C, Ho, Wo), x.dtype),
        grid=(N, HB),
        in_specs=[
            pl.BlockSpec((None, C, 2 * TP, W), lambda n, hb: (n, 0, hb, 0)),
            pl.BlockSpec((TP, 2 * TP), lambda n, hb: (0, 0)),
            pl.BlockSpec((W, Wo), lambda n, hb: (0, 0)),
        ],
        out_specs=pl.BlockSpec((None, C, TP, Wo), lambda n, hb: (n, 0, hb, 0)),
        compiler_params=pltpu.CompilerParams(
            dimension_semantics=("parallel", "parallel"),
            vmem_limit_bytes=_VMEM_LIMIT),
    )(x, ah, aw)


# ----------------------------------------------------------------------------
# Network definition
# ----------------------------------------------------------------------------
def _residual_block(x, p, conv_names, bn_name, *, residual_is_input):
    wa, ba = p[conv_names[0]]
    wb, bb_ = p[conv_names[1]]
    wc, bc = p[conv_names[2]]
    scale, offset = p[bn_name]
    if residual_is_input:
        # x0 = x ; x = relu(conv_a(x)) ; x = relu(conv_b(x))
        x0 = x
        h = conv2d(x, wa, ba, padding="same", relu_out=True)
        h = conv2d(h, wb, bb_, padding="same", relu_out=True)
    else:
        # x0 = conv_a(x) ; x = relu(conv_b(relu(x0)))
        x0 = conv2d(x, wa, ba, padding="same")
        h = conv2d(x0, wb, bb_, padding="same", relu_in=True, relu_out=True)
    y = conv2d(h, wc, bc, padding="same", relu_out=True)
    # dropout(p=0) == identity; residual add + folded eval-mode BN as one fused
    # XLA elementwise pass (f32 math) — XLA fuses this with the un-flatten of
    # the conv output, so no extra HBM pass is introduced.
    y = (y.astype(ACC) + x0.astype(ACC)) * scale[None, :, None, None] \
        + offset[None, :, None, None]
    return y.astype(DT)


def backbone_forward(x_nchw, p):
    """Phase0PointsBackbone forward.  x: (N, 3, H, W) -> (N, 32, H', W')."""
    x = x_nchw.astype(DT)

    x = _residual_block(x, p, ("conv_1", "conv_2", "conv_3"), "bn_123",
                        residual_is_input=False)
    x = avg_pool2(x)
    x = _residual_block(x, p, ("conv_4", "conv_5", "conv_6"), "bn_456",
                        residual_is_input=True)
    x = avg_pool2(x)
    x = _residual_block(x, p, ("conv_7", "conv_8", "conv_9"), "bn_789",
                        residual_is_input=False)
    x = avg_pool2(x)
    x = _residual_block(x, p, ("conv_10", "conv_11", "conv_12"), "bn_101112",
                        residual_is_input=True)
    x = avg_pool2(x)
    x = _residual_block(x, p, ("conv_13", "conv_14", "conv_15"), "bn_131415",
                        residual_is_input=True)
    x = avg_pool2(x)
    x = _residual_block(x, p, ("conv_16", "conv_17", "conv_18"), "bn_161718",
                        residual_is_input=False)
    x = avg_pool2(x)
    x = _residual_block(x, p, ("conv_19", "conv_20", "conv_21"), "bn_192021",
                        residual_is_input=True)
    x = avg_pool2(x)
    x = _residual_block(x, p, ("conv_22", "conv_23", "conv_24"), "bn_222324",
                        residual_is_input=True)
    x = avg_pool2(x)
    x = _residual_block(x, p, ("conv_25", "conv_26", "conv_27"), "bn_252627",
                        residual_is_input=True)

    wf, bf_ = p["final_conv"]
    x = conv2d(x, wf, bf_, padding="valid")
    return x.astype(jnp.float32)


# ----------------------------------------------------------------------------
# Deterministic parameter initialization (synthetic, no checkpoint)
# ----------------------------------------------------------------------------
def init_params(key):
    conv_specs = [  # (name, k, cin, cout)
        ("conv_1", 5, 3, 8), ("conv_2", 5, 8, 8), ("conv_3", 3, 8, 8),
        ("conv_4", 5, 8, 8), ("conv_5", 3, 8, 8), ("conv_6", 3, 8, 8),
        ("conv_7", 5, 8, 16), ("conv_8", 3, 16, 16), ("conv_9", 3, 16, 16),
        ("conv_10", 5, 16, 16), ("conv_11", 3, 16, 16), ("conv_12", 3, 16, 16),
        ("conv_13", 5, 16, 16), ("conv_14", 3, 16, 16), ("conv_15", 3, 16, 16),
        ("conv_16", 5, 16, 32), ("conv_17", 3, 32, 32), ("conv_18", 3, 32, 32),
        ("conv_19", 3, 32, 32), ("conv_20", 3, 32, 32), ("conv_21", 3, 32, 32),
        ("conv_22", 3, 32, 32), ("conv_23", 3, 32, 32), ("conv_24", 3, 32, 32),
        ("conv_25", 3, 32, 32), ("conv_26", 3, 32, 32), ("conv_27", 3, 32, 32),
        ("final_conv", 3, 32, 32),
    ]
    bn_specs = [("bn_123", 8), ("bn_456", 8), ("bn_789", 16), ("bn_101112", 16),
                ("bn_131415", 16), ("bn_161718", 32), ("bn_192021", 32),
                ("bn_222324", 32), ("bn_252627", 32)]

    keys = jax.random.split(key, len(conv_specs) + len(bn_specs))
    params = {}
    for (name, k, cin, cout), kk in zip(conv_specs, keys[:len(conv_specs)]):
        kw_key, kb_key = jax.random.split(kk)
        fan_in = cin * k * k
        w = jax.random.normal(kw_key, (cout, cin, k, k),
                              jnp.float32) * jnp.sqrt(2.0 / fan_in)
        b = 0.01 * jax.random.normal(kb_key, (cout,), jnp.float32)
        params[name] = (w, b)
    for (name, c), kk in zip(bn_specs, keys[len(conv_specs):]):
        k1, k2, k3, k4 = jax.random.split(kk, 4)
        gamma = 1.0 + 0.1 * jax.random.normal(k1, (c,), jnp.float32)
        beta = 0.1 * jax.random.normal(k2, (c,), jnp.float32)
        mean = 0.1 * jax.random.normal(k3, (c,), jnp.float32)
        var = jax.random.uniform(k4, (c,), jnp.float32, minval=0.5, maxval=1.5)
        scale = gamma * jax.lax.rsqrt(var + 1e-5)      # eval-mode BN folded
        offset = beta - mean * scale
        params[name] = (scale, offset)
    return params


# ----------------------------------------------------------------------------
# Small reference checks for the Pallas conv / pool kernels
# ----------------------------------------------------------------------------
def _ref_conv(x, w, b, padding):
    xb = x.astype(DT).astype(jnp.float32)
    wb = w.astype(DT).astype(jnp.float32)
    y = jax.lax.conv_general_dilated(
        xb, wb, window_strides=(1, 1), padding=padding.upper(),
        dimension_numbers=("NCHW", "OIHW", "NCHW"))
    return y + b[None, :, None, None]


def _nerr(a, b):
    a = jnp.asarray(a, jnp.float32)
    b = jnp.asarray(b, jnp.float32)
    return float(jnp.max(jnp.abs(a - b)) / (1.0 + jnp.max(jnp.abs(b))))


def _sanity_checks(key):
    k1, k2, k3, k4, k5 = jax.random.split(key, 5)

    # 5x5 'same' conv with Cin=3 (exercises the channel-padding path).
    x = jax.random.normal(k1, (2, 3, 16, 20), jnp.float32)
    w = 0.2 * jax.random.normal(k2, (8, 3, 5, 5), jnp.float32)
    b = 0.1 * jax.random.normal(k3, (8,), jnp.float32)
    assert _nerr(conv2d(x, w, b, padding="same"),
                 _ref_conv(x, w, b, "same")) < 2e-2

    # 3x3 'same' conv with input + output ReLU.
    x = jax.random.normal(k1, (1, 16, 12, 16), jnp.float32)
    w = 0.1 * jax.random.normal(k2, (16, 16, 3, 3), jnp.float32)
    b = 0.1 * jax.random.normal(k3, (16,), jnp.float32)
    got = conv2d(x, w, b, padding="same", relu_in=True, relu_out=True)
    ref = jnp.maximum(_ref_conv(jnp.maximum(x, 0.0), w, b, "same"), 0.0)
    assert _nerr(got, ref) < 2e-2

    # 3x3 'valid' conv (final_conv shape: 3x3 -> 1x1).
    x = jax.random.normal(k4, (1, 32, 3, 3), jnp.float32)
    w = 0.1 * jax.random.normal(k5, (32, 32, 3, 3), jnp.float32)
    b = 0.1 * jax.random.normal(k3, (32,), jnp.float32)
    assert _nerr(conv2d(x, w, b, padding="valid"),
                 _ref_conv(x, w, b, "valid")) < 2e-2

    # Larger 5x5 'same' conv that exercises multi-row-block tiling.
    x = jax.random.normal(k1, (1, 8, 96, 96), jnp.float32)
    w = 0.1 * jax.random.normal(k2, (8, 8, 5, 5), jnp.float32)
    b = 0.1 * jax.random.normal(k3, (8,), jnp.float32)
    assert _nerr(conv2d(x, w, b, padding="same"),
                 _ref_conv(x, w, b, "same")) < 2e-2

    # 2x2 average pool.
    x = jax.random.normal(k5, (2, 8, 8, 12), jnp.float32).astype(DT)
    ref = x.astype(jnp.float32).reshape(2, 8, 4, 2, 6, 2).mean(axis=(3, 5))
    assert _nerr(avg_pool2(x), ref) < 2e-2


# ----------------------------------------------------------------------------
if __name__ == "__main__":
    key = jax.random.PRNGKey(0)
    pkey, xkey, ckey = jax.random.split(key, 3)
    params = init_params(pkey)

    _sanity_checks(ckey)

    # Smallest spatial size consistent with the module: 8 AvgPool2d(2,2) stages
    # followed by a 'valid' 3x3 conv require H = W = 3 * 2**8 = 768.
    x = jax.random.normal(xkey, (1, 3, 768, 768), jnp.float32)

    out = jax.jit(backbone_forward)(x, params)
    out = jax.block_until_ready(out)

    assert out.shape == (1, 32, 1, 1), out.shape
    assert bool(jnp.all(jnp.isfinite(out)))
    print("KERNEL_OK")
</pallas_src>

<mosaic_0001>
module attributes {stable_mosaic.version = 11 : i64} {
  func.func @_conv_kernel(%arg0: i32, %arg1: i32, %arg2: memref<1x1x8x484xbf16, #tpu.memory_space<vmem>>, %arg3: memref<8x200xbf16, #tpu.memory_space<vmem>>, %arg4: memref<8x1xf32, #tpu.memory_space<vmem>>, %arg5: memref<1x1x8x384xbf16, #tpu.memory_space<vmem>>, %arg6: memref<200x384xbf16, #tpu.memory_space<vmem>>) attributes {dimension_semantics = [#tpu.dimension_semantics<parallel>, #tpu.dimension_semantics<parallel>], iteration_bounds = array<i64: 2, 1>, scalar_prefetch = 0 : i64, scratch_operands = 1 : i64, tpu.core_type = #tpu.core_type<tc>, window_params = [{transform_indices = @transform_0, window_bounds = array<i64: 1, 1, 8, 484>}, {pipeline_mode = #tpu.pipeline_mode<synchronous>, transform_indices = @transform_1, window_bounds = array<i64: 8, 200>}, {pipeline_mode = #tpu.pipeline_mode<synchronous>, transform_indices = @transform_2, window_bounds = array<i64: 8, 1>}, {transform_indices = @transform_3, window_bounds = array<i64: 1, 1, 8, 384>}]} {
    %c0 = arith.constant 0 : index
    %c0_0 = arith.constant 0 : index
    %c0_1 = arith.constant 0 : index
    %c0_2 = arith.constant 0 : index
    %0 = vector.load %arg2[%c0, %c0_0, %c0_1, %c0_2] : memref<1x1x8x484xbf16, #tpu.memory_space<vmem>>, vector<1x1x8x484xbf16>
    %1 = vector.shape_cast %0 : vector<1x1x8x484xbf16> to vector<8x484xbf16>
    %2 = vector.extract_strided_slice %1 {offsets = [0, 0], sizes = [8, 384], strides = [1, 1]} : vector<8x484xbf16> to vector<8x384xbf16>
    %c0_3 = arith.constant 0 : index
    %c0_4 = arith.constant 0 : index
    %3 = vector.load %arg6[%c0_3, %c0_4] : memref<200x384xbf16, #tpu.memory_space<vmem>>, vector<8x384xbf16>
    tpu.vector_store %arg6[%c0_3, %c0_4], %2 {strides = array<i32>} : memref<200x384xbf16, #tpu.memory_space<vmem>>, vector<8x384xbf16>,
    %4 = vector.extract_strided_slice %1 {offsets = [0, 1], sizes = [8, 384], strides = [1, 1]} : vector<8x484xbf16> to vector<8x384xbf16>
    %c8 = arith.constant 8 : index
    %c0_5 = arith.constant 0 : index
    %5 = vector.load %arg6[%c8, %c0_5] : memref<200x384xbf16, #tpu.memory_space<vmem>>, vector<8x384xbf16>
    tpu.vector_store %arg6[%c8, %c0_5], %4 {strides = array<i32>} : memref<200x384xbf16, #tpu.memory_space<vmem>>, vector<8x384xbf16>,
    %6 = vector.extract_strided_slice %1 {offsets = [0, 2], sizes = [8, 384], strides = [1, 1]} : vector<8x484xbf16> to vector<8x384xbf16>
    %c16 = arith.constant 16 : index
    %c0_6 = arith.constant 0 : index
    %7 = vector.load %arg6[%c16, %c0_6] : memref<200x384xbf16, #tpu.memory_space<vmem>>, vector<8x384xbf16>
    tpu.vector_store %arg6[%c16, %c0_6], %6 {strides = array<i32>} : memref<200x384xbf16, #tpu.memory_space<vmem>>, vector<8x384xbf16>,
    %8 = vector.extract_strided_slice %1 {offsets = [0, 3], sizes = [8, 384], strides = [1, 1]} : vector<8x484xbf16> to vector<8x384xbf16>
    %c24 = arith.constant 24 : index
    %c0_7 = arith.constant 0 : index
    %9 = vector.load %arg6[%c24, %c0_7] : memref<200x384xbf16, #tpu.memory_space<vmem>>, vector<8x384xbf16>
    tpu.vector_store %arg6[%c24, %c0_7], %8 {strides = array<i32>} : memref<200x384xbf16, #tpu.memory_space<vmem>>, vector<8x384xbf16>,
    %10 = vector.extract_strided_slice %1 {offsets = [0, 4], sizes = [8, 384], strides = [1, 1]} : vector<8x484xbf16> to vector<8x384xbf16>
    %c32 = arith.constant 32 : index
    %c0_8 = arith.constant 0 : index
    %11 = vector.load %arg6[%c32, %c0_8] : memref<200x384xbf16, #tpu.memory_space<vmem>>, vector<8x384xbf16>
    tpu.vector_store %arg6[%c32, %c0_8], %10 {strides = array<i32>} : memref<200x384xbf16, #tpu.memory_space<vmem>>, vector<8x384xbf16>,
    %12 = vector.extract_strided_slice %1 {offsets = [0, 24], sizes = [8, 384], strides = [1, 1]} : vector<8x484xbf16> to vector<8x384xbf16>
    %c40 = arith.constant 40 : index
    %c0_9 = arith.constant 0 : index
    %13 = vector.load %arg6[%c40, %c0_9] : memref<200x384xbf16, #tpu.memory_space<vmem>>, vector<8x384xbf16>
    tpu.vector_store %arg6[%c40, %c0_9], %12 {strides = array<i32>} : memref<200x384xbf16, #tpu.memory_space<vmem>>, vector<8x384xbf16>,
    %14 = vector.extract_strided_slice %1 {offsets = [0, 25], sizes = [8, 384], strides = [1, 1]} : vector<8x484xbf16> to vector<8x384xbf16>
    %c48 = arith.constant 48 : index
    %c0_10 = arith.constant 0 : index
    %15 = vector.load %arg6[%c48, %c0_10] : memref<200x384xbf16, #tpu.memory_space<vmem>>, vector<8x384xbf16>
    tpu.vector_store %arg6[%c48, %c0_10], %14 {strides = array<i32>} : memref<200x384xbf16, #tpu.memory_space<vmem>>, vector<8x384xbf16>,
    %16 = vector.extract_strided_slice %1 {offsets = [0, 26], sizes = [8, 384], strides = [1, 1]} : vector<8x484xbf16> to vector<8x384xbf16>
    %c56 = arith.constant 56 : index
    %c0_11 = arith.constant 0 : index
    %17 = vector.load %arg6[%c56, %c0_11] : memref<200x384xbf16, #tpu.memory_space<vmem>>, vector<8x384xbf16>
    tpu.vector_store %arg6[%c56, %c0_11], %16 {strides = array<i32>} : memref<200x384xbf16, #tpu.memory_space<vmem>>, vector<8x384xbf16>,
    %18 = vector.extract_strided_slice %1 {offsets = [0, 27], sizes = [8, 384], strides = [1, 1]} : vector<8x484xbf16> to vector<8x384xbf16>
    %c64 = arith.constant 64 : index
    %c0_12 = arith.constant 0 : index
    %19 = vector.load %arg6[%c64, %c0_12] : memref<200x384xbf16, #tpu.memory_space<vmem>>, vector<8x384xbf16>
    tpu.vector_store %arg6[%c64, %c0_12], %18 {strides = array<i32>} : memref<200x384xbf16, #tpu.memory_space<vmem>>, vector<8x384xbf16>,
    %20 = vector.extract_strided_slice %1 {offsets = [0, 28], sizes = [8, 384], strides = [1, 1]} : vector<8x484xbf16> to vector<8x384xbf16>
    %c72 = arith.constant 72 : index
    %c0_13 = arith.constant 0 : index
    %21 = vector.load %arg6[%c72, %c0_13] : memref<200x384xbf16, #tpu.memory_space<vmem>>, vector<8x384xbf16>
    tpu.vector_store %arg6[%c72, %c0_13], %20 {strides = array<i32>} : memref<200x384xbf16, #tpu.memory_space<vmem>>, vector<8x384xbf16>,
    %22 = vector.extract_strided_slice %1 {offsets = [0, 48], sizes = [8, 384], strides = [1, 1]} : vector<8x484xbf16> to vector<8x384xbf16>
    %c80 = arith.constant 80 : index
    %c0_14 = arith.constant 0 : index
    %23 = vector.load %arg6[%c80, %c0_14] : memref<200x384xbf16, #tpu.memory_space<vmem>>, vector<8x384xbf16>
    tpu.vector_store %arg6[%c80, %c0_14], %22 {strides = array<i32>} : memref<200x384xbf16, #tpu.memory_space<vmem>>, vector<8x384xbf16>,
    %24 = vector.extract_strided_slice %1 {offsets = [0, 49], sizes = [8, 384], strides = [1, 1]} : vector<8x484xbf16> to vector<8x384xbf16>
    %c88 = arith.constant 88 : index
    %c0_15 = arith.constant 0 : index
    %25 = vector.load %arg6[%c88, %c0_15] : memref<200x384xbf16, #tpu.memory_space<vmem>>, vector<8x384xbf16>
    tpu.vector_store %arg6[%c88, %c0_15], %24 {strides = array<i32>} : memref<200x384xbf16, #tpu.memory_space<vmem>>, vector<8x384xbf16>,
    %26 = vector.extract_strided_slice %1 {offsets = [0, 50], sizes = [8, 384], strides = [1, 1]} : vector<8x484xbf16> to vector<8x384xbf16>
    %c96 = arith.constant 96 : index
    %c0_16 = arith.constant 0 : index
    %27 = vector.load %arg6[%c96, %c0_16] : memref<200x384xbf16, #tpu.memory_space<vmem>>, vector<8x384xbf16>
    tpu.vector_store %arg6[%c96, %c0_16], %26 {strides = array<i32>} : memref<200x384xbf16, #tpu.memory_space<vmem>>, vector<8x384xbf16>,
    %28 = vector.extract_strided_slice %1 {offsets = [0, 51], sizes = [8, 384], strides = [1, 1]} : vector<8x484xbf16> to vector<8x384xbf16>
    %c104 = arith.constant 104 : index
    %c0_17 = arith.constant 0 : index
    %29 = vector.load %arg6[%c104, %c0_17] : memref<200x384xbf16, #tpu.memory_space<vmem>>, vector<8x384xbf16>
    tpu.vector_store %arg6[%c104, %c0_17], %28 {strides = array<i32>} : memref<200x384xbf16, #tpu.memory_space<vmem>>, vector<8x384xbf16>,
    %30 = vector.extract_strided_slice %1 {offsets = [0, 52], sizes = [8, 384], strides = [1, 1]} : vector<8x484xbf16> to vector<8x384xbf16>
    %c112 = arith.constant 112 : index
    %c0_18 = arith.constant 0 : index
    %31 = vector.load %arg6[%c112, %c0_18] : memref<200x384xbf16, #tpu.memory_space<vmem>>, vector<8x384xbf16>
    tpu.vector_store %arg6[%c112, %c0_18], %30 {strides = array<i32>} : memref<200x384xbf16, #tpu.memory_space<vmem>>, vector<8x384xbf16>,
    %32 = vector.extract_strided_slice %1 {offsets = [0, 72], sizes = [8, 384], strides = [1, 1]} : vector<8x484xbf16> to vector<8x384xbf16>
    %c120 = arith.constant 120 : index
    %c0_19 = arith.constant 0 : index
    %33 = vector.load %arg6[%c120, %c0_19] : memref<200x384xbf16, #tpu.memory_space<vmem>>, vector<8x384xbf16>
    tpu.vector_store %arg6[%c120, %c0_19], %32 {strides = array<i32>} : memref<200x384xbf16, #tpu.memory_space<vmem>>, vector<8x384xbf16>,
    %34 = vector.extract_strided_slice %1 {offsets = [0, 73], sizes = [8, 384], strides = [1, 1]} : vector<8x484xbf16> to vector<8x384xbf16>
    %c128 = arith.constant 128 : index
    %c0_20 = arith.constant 0 : index
    %35 = vector.load %arg6[%c128, %c0_20] : memref<200x384xbf16, #tpu.memory_space<vmem>>, vector<8x384xbf16>
    tpu.vector_store %arg6[%c128, %c0_20], %34 {strides = array<i32>} : memref<200x384xbf16, #tpu.memory_space<vmem>>, vector<8x384xbf16>,
    %36 = vector.extract_strided_slice %1 {offsets = [0, 74], sizes = [8, 384], strides = [1, 1]} : vector<8x484xbf16> to vector<8x384xbf16>
    %c136 = arith.constant 136 : index
    %c0_21 = arith.constant 0 : index
    %37 = vector.load %arg6[%c136, %c0_21] : memref<200x384xbf16, #tpu.memory_space<vmem>>, vector<8x384xbf16>
    tpu.vector_store %arg6[%c136, %c0_21], %36 {strides = array<i32>} : memref<200x384xbf16, #tpu.memory_space<vmem>>, vector<8x384xbf16>,
    %38 = vector.extract_strided_slice %1 {offsets = [0, 75], sizes = [8, 384], strides = [1, 1]} : vector<8x484xbf16> to vector<8x384xbf16>
    %c144 = arith.constant 144 : index
    %c0_22 = arith.constant 0 : index
    %39 = vector.load %arg6[%c144, %c0_22] : memref<200x384xbf16, #tpu.memory_space<vmem>>, vector<8x384xbf16>
    tpu.vector_store %arg6[%c144, %c0_22], %38 {strides = array<i32>} : memref<200x384xbf16, #tpu.memory_space<vmem>>, vector<8x384xbf16>,
    %40 = vector.extract_strided_slice %1 {offsets = [0, 76], sizes = [8, 384], strides = [1, 1]} : vector<8x484xbf16> to vector<8x384xbf16>
    %c152 = arith.constant 152 : index
    %c0_23 = arith.constant 0 : index
    %41 = vector.load %arg6[%c152, %c0_23] : memref<200x384xbf16, #tpu.memory_space<vmem>>, vector<8x384xbf16>
    tpu.vector_store %arg6[%c152, %c0_23], %40 {strides = array<i32>} : memref<200x384xbf16, #tpu.memory_space<vmem>>, vector<8x384xbf16>,
    %42 = vector.extract_strided_slice %1 {offsets = [0, 96], sizes = [8, 384], strides = [1, 1]} : vector<8x484xbf16> to vector<8x384xbf16>
    %c160 = arith.constant 160 : index
    %c0_24 = arith.constant 0 : index
    %43 = vector.load %arg6[%c160, %c0_24] : memref<200x384xbf16, #tpu.memory_space<vmem>>, vector<8x384xbf16>
    tpu.vector_store %arg6[%c160, %c0_24], %42 {strides = array<i32>} : memref<200x384xbf16, #tpu.memory_space<vmem>>, vector<8x384xbf16>,
    %44 = vector.extract_strided_slice %1 {offsets = [0, 97], sizes = [8, 384], strides = [1, 1]} : vector<8x484xbf16> to vector<8x384xbf16>
    %c168 = arith.constant 168 : index
    %c0_25 = arith.constant 0 : index
    %45 = vector.load %arg6[%c168, %c0_25] : memref<200x384xbf16, #tpu.memory_space<vmem>>, vector<8x384xbf16>
    tpu.vector_store %arg6[%c168, %c0_25], %44 {strides = array<i32>} : memref<200x384xbf16, #tpu.memory_space<vmem>>, vector<8x384xbf16>,
    %46 = vector.extract_strided_slice %1 {offsets = [0, 98], sizes = [8, 384], strides = [1, 1]} : vector<8x484xbf16> to vector<8x384xbf16>
    %c176 = arith.constant 176 : index
    %c0_26 = arith.constant 0 : index
    %47 = vector.load %arg6[%c176, %c0_26] : memref<200x384xbf16, #tpu.memory_space<vmem>>, vector<8x384xbf16>
    tpu.vector_store %arg6[%c176, %c0_26], %46 {strides = array<i32>} : memref<200x384xbf16, #tpu.memory_space<vmem>>, vector<8x384xbf16>,
    %48 = vector.extract_strided_slice %1 {offsets = [0, 99], sizes = [8, 384], strides = [1, 1]} : vector<8x484xbf16> to vector<8x384xbf16>
    %c184 = arith.constant 184 : index
    %c0_27 = arith.constant 0 : index
    %49 = vector.load %arg6[%c184, %c0_27] : memref<200x384xbf16, #tpu.memory_space<vmem>>, vector<8x384xbf16>
    tpu.vector_store %arg6[%c184, %c0_27], %48 {strides = array<i32>} : memref<200x384xbf16, #tpu.memory_space<vmem>>, vector<8x384xbf16>,
    %50 = vector.extract_strided_slice %1 {offsets = [0, 100], sizes = [8, 384], strides = [1, 1]} : vector<8x484xbf16> to vector<8x384xbf16>
    %c192 = arith.constant 192 : index
    %c0_28 = arith.constant 0 : index
    %51 = vector.load %arg6[%c192, %c0_28] : memref<200x384xbf16, #tpu.memory_space<vmem>>, vector<8x384xbf16>
    tpu.vector_store %arg6[%c192, %c0_28], %50 {strides = array<i32>} : memref<200x384xbf16, #tpu.memory_space<vmem>>, vector<8x384xbf16>,
    %c0_29 = arith.constant 0 : index
    %c0_30 = arith.constant 0 : index
    %52 = vector.load %arg3[%c0_29, %c0_30] : memref<8x200xbf16, #tpu.memory_space<vmem>>, vector<8x200xbf16>
    %c0_31 = arith.constant 0 : index
    %c0_32 = arith.constant 0 : index
    %53 = vector.load %arg6[%c0_31, %c0_32] : memref<200x384xbf16, #tpu.memory_space<vmem>>, vector<200x384xbf16>
    %cst = arith.constant dense<0.000000e+00> : vector<8x384xf32>
    %54 = tpu.matmul %52, %53, %cst {dimension_numbers = #tpu.dot_dimension_numbers<[1], [0], [0], [1], [0, 0, 1, 1], [], []>} : vector<8x200xbf16>, vector<200x384xbf16>, vector<8x384xf32> -> vector<8x384xf32>
    %c0_33 = arith.constant 0 : index
    %c0_34 = arith.constant 0 : index
    %55 = vector.load %arg4[%c0_33, %c0_34] : memref<8x1xf32, #tpu.memory_space<vmem>>, vector<8x1xf32>
    %56 = vector.broadcast %55 : vector<8x1xf32> to vector<8x384xf32>
    %57 = arith.addf %54, %56 : vector<8x384xf32>
    %58 = arith.truncf %57 : vector<8x384xf32> to vector<8x384xbf16>
    %c0_35 = arith.constant 0 : index
    %c0_36 = arith.constant 0 : index
    %c0_37 = arith.constant 0 : index
    %c0_38 = arith.constant 0 : index
    %59 = vector.load %arg5[%c0_35, %c0_36, %c0_37, %c0_38] : memref<1x1x8x384xbf16, #tpu.memory_space<vmem>>, vector<1x1x8x384xbf16>
    %60 = vector.shape_cast %59 : vector<1x1x8x384xbf16> to vector<8x384xbf16>
    %61 = vector.shape_cast %58 : vector<8x384xbf16> to vector<1x1x8x384xbf16>
    tpu.vector_store %arg5[%c0_35, %c0_36, %c0_37, %c0_38], %61 {strides = array<i32>} : memref<1x1x8x384xbf16, #tpu.memory_space<vmem>>, vector<1x1x8x384xbf16>,
    return
  }
  func.func @transform_0(%arg0: i32, %arg1: i32) -> (i32, i32, i32, i32) {
    %c0_i32 = arith.constant 0 : i32
    %c0_i32_0 = arith.constant 0 : i32
    %c0_i32_1 = arith.constant 0 : i32
    return %arg0, %arg1, %c0_i32, %c0_i32_0 : i32, i32, i32, i32
  }
  func.func @transform_1(%arg0: i32, %arg1: i32) -> (i32, i32) {
    %c0_i32 = arith.constant 0 : i32
    %c0_i32_0 = arith.constant 0 : i32
    %c0_i32_1 = arith.constant 0 : i32
    return %c0_i32, %c0_i32_0 : i32, i32
  }
  func.func @transform_2(%arg0: i32, %arg1: i32) -> (i32, i32) {
    %c0_i32 = arith.constant 0 : i32
    %c0_i32_0 = arith.constant 0 : i32
    %c0_i32_1 = arith.constant 0 : i32
    return %c0_i32, %c0_i32_0 : i32, i32
  }
  func.func @transform_3(%arg0: i32, %arg1: i32) -> (i32, i32, i32, i32) {
    %c0_i32 = arith.constant 0 : i32
    %c0_i32_0 = arith.constant 0 : i32
    %c0_i32_1 = arith.constant 0 : i32
    return %arg0, %arg1, %c0_i32, %c0_i32_0 : i32, i32, i32, i32
  }
}

</mosaic_0001>

<llo_original>
// kernel: tpu_custom_call.1
$region0: #{tpu_custom_call.1}
  #allocation0 [shape = 'u32[]', space=smem, size = 0x4, offset = 0x4, fixed_abs, tag = 'smem constant byte address 0x4 - core index']
  #allocation1 [shape = 'u32[144,128]{1,0:T(1,128)}', space=vmem, size = 0x12000, scoped, tag = 'internal scratch']
  #allocation2 [shape = 'bf16[200,384]{1,0:T(8,128)(2,1)}', space=vmem, size = 0x25800, scoped, tag = 'scratch operand']
  %s0 = inlined_call_operand.hbm [shape: bf16[2,1,8,484], index: 0, kind: input, shape index: {}]
  %s1 = inlined_call_operand.vmem [shape: bf16[8,200], index: 1, kind: input, shape index: {}]
  %s2 = inlined_call_operand.vmem [shape: f32[8,1], index: 2, kind: input, shape index: {}]
  %s3 = inlined_call_operand.hbm [shape: bf16[2,1,8,384], index: 3, kind: output, shape index: {}]
  %s4 = sld [smem:[#allocation0]]
  $region49: #{tpu_custom_call.1} parent=0
    _
  %s6 = ssub.s32 1, %s4
  %s7 = scalar_select 0, %s6, %s4
  $region1: #{tpu_custom_call.1} parent=0
    #allocation3 [shape = 'u8[16384]{0}', space=vmem, size = 0x4000, scoped, tag = 'input window, operand 0']
    #allocation4 [shape = 's32[2]{0}', space=sflag, size = 0x8, scoped, tag = 'scoped memory for tpu_custom_call.1']
    #allocation5 [shape = 's32[2]{0}', space=sflag, size = 0x8, scoped, tag = 'scoped memory for tpu_custom_call.1']
    #allocation6 [shape = 'u8[12288]{0}', space=vmem, size = 0x3000, scoped, tag = 'output window, operand 0']
    %8 = vsyncpa [#allocation4], 0
    %s9 = scalar_lea.sflag [#allocation4], 1
    %10 = vsyncpa %s9, 0
    %11 = vsyncpa [#allocation5], 0
    %s12 = scalar_lea.sflag [#allocation5], 1
    %13 = vsyncpa %s12, 0
    loop: start=0, step=1, limit=4
    $region2: #{tpu_custom_call.1} parent=1 // loop_pre_header
      _
    $region3: #{tpu_custom_call.1} parent=1 // loop_header
      %s15 = sphi 0, %s19
      %p16 = scmp.ge.s32.totalorder %s15, 4
      %s22 = sphi 0, %s34
      %s23 = sphi 0, %s30
      %s24 = sphi 0, %s22
      %s25 = sphi 0, %s23
      %s26 = sphi 0, %s24
      %s27 = sphi 0, %s25
      %s39 = sphi 0, %s41
      %s42 = sphi 0, %s39
      %s43 = sphi 0, %s42
      %s59 = sphi 0, %s43
      %s63 = sphi 0, %s63
      %s65 = sphi 0, %s63
      %s66 = sphi 0, %s65
      %s80 = sphi 0, %s66
      %s84 = sphi 0, %s84
      %s86 = sphi 0, %s84
      %s87 = sphi 0, %s86
      %s101 = sphi 0, %s87
      %s109 = sphi 0, %s111
      %s112 = sphi 0, %s109
      %s113 = sphi 0, %s112
      %s129 = sphi 0, %s113
    $region4: #{tpu_custom_call.1} parent=1 // loop_header_branch
      %18 = sbr.rel (%p16) target = $region8
    $region5: #{tpu_custom_call.1} parent=1 // loop_body
      %s20 = ssub.s32 %s15, 1
      %s21 = ssub.s32 %s15, 2
      %s28 = sadd.s32 1, %s23
      %p29 = scmp.ge.s32.totalorder %s28, 1
      %s30 = scalar_select %p29, 0, %s28
      %s31 = sadd.s32 1, %s22
      %s32 = scalar_select %p29, %s31, %s22
      %p33 = scmp.ge.s32.totalorder %s32, 2
      %s34 = scalar_select %p33, 0, %s32
      %s35 = ssub.s32 %s22, %s34
      %s36 = ssub.s32 %s23, %s30
      %s37 = sor.u32 %s35, %s36
      %p38 = scmp.eq.s32.totalorder %s37, 0
      %s40 = sadd.s32 %s39, 1
      %s41 = scalar_select %p38, %s39, %s40
      %p44 = pneg %p38
      %p45 = scmp.eq.s32.totalorder %s15, 1
      %p46 = por %p44, %p45
      %p47 = scmp.ne.s32.totalorder %s39, %s42
      %p48 = scmp.eq.s32.totalorder %s15, 0
      %p49 = por %p47, %p48
      %p50 = scmp.ne.s32.totalorder %s39, %s42
      %p51 = scmp.eq.s32.totalorder %s20, 1
      %p52 = por %p50, %p51
      %p53 = scmp.ne.s32.totalorder %s42, %s43
      %p54 = scmp.eq.s32.totalorder %s20, 0
      %p55 = por %p53, %p54
      %p56 = scmp.ne.s32.totalorder %s42, %s43
      %p57 = scmp.eq.s32.totalorder %s21, 1
      %p58 = por %p56, %p57
      %p60 = scmp.ne.s32.totalorder %s43, %s59
      %p61 = scmp.eq.s32.totalorder %s21, 0
      %p62 = por %p60, %p61
      %s64 = sadd.s32 %s63, 1
      %p67 = scmp.eq.s32.totalorder %s15, 1
      %p68 = scmp.ne.s32.totalorder %s63, %s65
      %p69 = scmp.eq.s32.totalorder %s15, 0
      %p70 = por %p68, %p69
      %p71 = scmp.ne.s32.totalorder %s63, %s65
      %p72 = scmp.eq.s32.totalorder %s20, 1
      %p73 = por %p71, %p72
      %p74 = scmp.ne.s32.totalorder %s65, %s66
      %p75 = scmp.eq.s32.totalorder %s20, 0
      %p76 = por %p74, %p75
      %p77 = scmp.ne.s32.totalorder %s65, %s66
      %p78 = scmp.eq.s32.totalorder %s21, 1
      %p79 = por %p77, %p78
      %p81 = scmp.ne.s32.totalorder %s66, %s80
      %p82 = scmp.eq.s32.totalorder %s21, 0
      %p83 = por %p81, %p82
      %s85 = sadd.s32 %s84, 1
      %p88 = scmp.eq.s32.totalorder %s15, 1
      %p89 = scmp.ne.s32.totalorder %s84, %s86
      %p90 = scmp.eq.s32.totalorder %s15, 0
      %p91 = por %p89, %p90
      %p92 = scmp.ne.s32.totalorder %s84, %s86
      %p93 = scmp.eq.s32.totalorder %s20, 1
      %p94 = por %p92, %p93
      %p95 = scmp.ne.s32.totalorder %s86, %s87
      %p96 = scmp.eq.s32.totalorder %s20, 0
      %p97 = por %p95, %p96
      %p98 = scmp.ne.s32.totalorder %s86, %s87
      %p99 = scmp.eq.s32.totalorder %s21, 1
      %p100 = por %p98, %p99
      %p102 = scmp.ne.s32.totalorder %s87, %s101
      %p103 = scmp.eq.s32.totalorder %s21, 0
      %p104 = por %p102, %p103
      %s105 = ssub.s32 %s22, %s34
      %s106 = ssub.s32 %s23, %s30
      %s107 = sor.u32 %s105, %s106
      %p108 = scmp.eq.s32.totalorder %s107, 0
      %s110 = sadd.s32 %s109, 1
      %s111 = scalar_select %p108, %s109, %s110
      %p114 = pneg %p108
      %p115 = scmp.eq.s32.totalorder %s15, 1
      %p116 = por %p114, %p115
      %p117 = scmp.ne.s32.totalorder %s109, %s112
      %p118 = scmp.eq.s32.totalorder %s15, 0
      %p119 = por %p117, %p118
      %p120 = scmp.ne.s32.totalorder %s109, %s112
      %p121 = scmp.eq.s32.totalorder %s20, 1
      %p122 = por %p120, %p121
      %p123 = scmp.ne.s32.totalorder %s112, %s113
      %p124 = scmp.eq.s32.totalorder %s20, 0
      %p125 = por %p123, %p124
      %p126 = scmp.ne.s32.totalorder %s112, %s113
      %p127 = scmp.eq.s32.totalorder %s21, 1
      %p128 = por %p126, %p127
      %p130 = scmp.ne.s32.totalorder %s113, %s129
      %p131 = scmp.eq.s32.totalorder %s21, 0
      %p132 = por %p130, %p131
      %p133 = scmp.le.s32.totalorder 1, %s15
      %p134 = scmp.lt.s32.totalorder %s15, 3
      %p135 = pnand %p133, %p134
      %p136 = pneg %p135
      // Predicated region
      $region9: #{tpu_custom_call.1} parent=5 // pred_check
        _
      $region10: #{tpu_custom_call.1} parent=5 // pred_check_branch
        %138 = sbr.rel (%p135) target = $region12
      $region11: #{tpu_custom_call.1} parent=5 // pred_region
        %s139 = ssub.s32 %s15, 1
        // Predicated region
        $region13: #{tpu_custom_call.1} parent=11 // pred_check
          %p140 = pneg %p76
        $region14: #{tpu_custom_call.1} parent=11 // pred_check_branch
          %142 = sbr.rel (%p140) target = $region16
        $region15: #{tpu_custom_call.1} parent=11 // pred_region
          _
        $region16: #{tpu_custom_call.1} parent=11 // pred_fallthru
          _
        // Predicated region
        $region17: #{tpu_custom_call.1} parent=11 // pred_check
          %p143 = pneg %p97
        $region18: #{tpu_custom_call.1} parent=11 // pred_check_branch
          %145 = sbr.rel (%p143) target = $region20
        $region19: #{tpu_custom_call.1} parent=11 // pred_region
          _
        $region20: #{tpu_custom_call.1} parent=11 // pred_fallthru
          _
      $region12: #{tpu_custom_call.1} parent=5 // pred_fallthru
        _
      %p146 = scmp.lt.s32.totalorder %s15, 2
      // Predicated region
      $region21: #{tpu_custom_call.1} parent=5 // pred_check
        %p147 = pneg %p146
      $region22: #{tpu_custom_call.1} parent=5 // pred_check_branch
        %149 = sbr.rel (%p147) target = $region24
      $region23: #{tpu_custom_call.1} parent=5 // pred_region
        // Predicated region
        $region25: #{tpu_custom_call.1} parent=23 // pred_check
          %p150 = pneg %p49
        $region26: #{tpu_custom_call.1} parent=23 // pred_check_branch
          %152 = sbr.rel (%p150) target = $region28
        $region27: #{tpu_custom_call.1} parent=23 // pred_region
          %s153 = sand.u32 %s39, 1
          %s154 = scalar_lea.sflag [#allocation4], %s153
          %s155 = sand.u32 %s39, 1
          %s156 = smul.addr %s155, 16
          %s157 = scalar_lea.vmem [#allocation3], %s156
          %s159 = ssub.s32 256, 256
          %160 = vsyncadd %s154, %s159
          %s161 = smul.addr %s23, 4
          %s162 = smul.addr %s22, 4
          %s163 = sadd.s32 %s161, %s162
          %s164 = smul.addr %s163, 64
          %s165 = scalar_lea.hbm %s0, %s164
          %s167 = sshll.u32 %s157, 4
          %s168 = int_to_ptr.vmem [resolvable:$true] %s167
          %170 = dma.hbm_to_vmem [thread:$0]  %s165, 256, %s168, %s154
        $region28: #{tpu_custom_call.1} parent=23 // pred_fallthru
          _
      $region24: #{tpu_custom_call.1} parent=5 // pred_fallthru
        _
      %p171 = scmp.le.s32.totalorder 1, %s15
      %p172 = scmp.lt.s32.totalorder %s15, 3
      %p173 = pnand %p171, %p172
      %p174 = pneg %p173
      // Predicated region
      $region29: #{tpu_custom_call.1} parent=5 // pred_check
        _
      $region30: #{tpu_custom_call.1} parent=5 // pred_check_branch
        %176 = sbr.rel (%p173) target = $region32
      $region31: #{tpu_custom_call.1} parent=5 // pred_region
        %s177 = ssub.s32 %s15, 1
        %s178 = sand.u32 %s42, 1
        %s179 = scalar_lea.sflag [#allocation4], %s178
        %s180 = sand.u32 %s42, 1
        %s181 = smul.addr %s180, 16
        %s182 = scalar_lea.vmem [#allocation3], %s181
        // Predicated region
        $region33: #{tpu_custom_call.1} parent=31 // pred_check
          %p183 = pneg %p55
        $region34: #{tpu_custom_call.1} parent=31 // pred_check_branch
          %185 = sbr.rel (%p183) target = $region36
        $region35: #{tpu_custom_call.1} parent=31 // pred_region
          %186 = dma.done %s179, 256
        $region36: #{tpu_custom_call.1} parent=31 // pred_fallthru
          _
        %s187 = sand.u32 %s42, 1
        %s188 = scalar_lea.sflag [#allocation4], %s187
        %s189 = sand.u32 %s42, 1
        %s190 = smul.addr %s189, 16
        %s191 = scalar_lea.vmem [#allocation3], %s190
        %p192 = pneg %p55
        %p193 = pneg %p52
        %p194 = pneg %p76
        %p195 = pneg %p73
        %p196 = pneg %p97
        %p197 = pneg %p94
        %p198 = pneg %p125
        %p199 = pneg %p122
        %s200 = sand.u32 %s112, 1
        %s201 = scalar_lea.sflag [#allocation5], %s200
        %s202 = sand.u32 %s112, 1
        %s203 = smul.addr %s202, 12
        %s204 = scalar_lea.vmem [#allocation6], %s203
        %v206 = vld [vmem:[%s182] sm:$0xff]
        %v207 = vld [vmem:[%s182 + $0x8] sm:$0xff]
        %208 = vst [vmem:[#allocation2] sm:$0xff] %v206
        %209 = vst [vmem:[#allocation2 + $0x8] sm:$0xf] %v207
        %212 = vrot.lane.b32.xlu0 %v206, 127
        %v213 = vpop.permute.xlu0 %212
        %214 = vrot.lane.b32.xlu0 %v207, 127
        %v215 = vpop.permute.xlu0 %214
        %v216 = vrot.slane %v213, 4
        %v217 = vrot.slane %v215, 4
        %vm218 = vcmask 1043456
        %v219 = vsel %vm218, %v216, %v217
        %vm220 = vcmask 1039360
        %v221 = vsel %vm220, %v213, %v219
        %v222 = vsel %vm220, %v215, %v217
        %225 = vst [vmem:[#allocation2 + $0xc] sm:$0xff] %v221
        %226 = vst [vmem:[#allocation2 + $0x14] sm:$0xf] %v222
        %227 = vrot.lane.b32.xlu0 %v206, 126
        %v228 = vpop.permute.xlu0 %227
        %229 = vrot.lane.b32.xlu0 %v207, 126
        %v230 = vpop.permute.xlu0 %229
        %v231 = vrot.slane %v228, 4
        %v232 = vrot.slane %v230, 4
        %v233 = vsel %vm218, %v231, %v232
        %vm234 = vcmask 1031168
        %v235 = vsel %vm234, %v228, %v233
        %v236 = vsel %vm234, %v230, %v232
        %239 = vst [vmem:[#allocation2 + $0x18] sm:$0xff] %v235
        %240 = vst [vmem:[#allocation2 + $0x20] sm:$0xf] %v236
        %241 = vrot.lane.b32.xlu0 %v206, 125
        %v242 = vpop.permute.xlu0 %241
        %243 = vrot.lane.b32.xlu0 %v207, 125
        %v244 = vpop.permute.xlu0 %243
        %v245 = vrot.slane %v242, 4
        %v246 = vrot.slane %v244, 4
        %v247 = vsel %vm218, %v245, %v246
        %vm248 = vcmask 1022976
        %v249 = vsel %vm248, %v242, %v247
        %v250 = vsel %vm248, %v244, %v246
        %253 = vst [vmem:[#allocation2 + $0x24] sm:$0xff] %v249
        %254 = vst [vmem:[#allocation2 + $0x2c] sm:$0xf] %v250
        %255 = vrot.lane.b32.xlu0 %v206, 124
        %v256 = vpop.permute.xlu0 %255
        %257 = vrot.lane.b32.xlu0 %v207, 124
        %v258 = vpop.permute.xlu0 %257
        %v259 = vrot.slane %v256, 4
        %v260 = vrot.slane %v258, 4
        %v261 = vsel %vm218, %v259, %v260
        %vm262 = vcmask 1014784
        %v263 = vsel %vm262, %v256, %v261
        %v264 = vsel %vm262, %v258, %v260
        %267 = vst [vmem:[#allocation2 + $0x30] sm:$0xff] %v263
        %268 = vst [vmem:[#allocation2 + $0x38] sm:$0xf] %v264
        %269 = vrot.lane.b32.xlu0 %v206, 104
        %v270 = vpop.permute.xlu0 %269
        %271 = vrot.lane.b32.xlu0 %v207, 104
        %v272 = vpop.permute.xlu0 %271
        %v273 = vrot.slane %v270, 4
        %v274 = vrot.slane %v272, 4
        %v275 = vsel %vm218, %v273, %v274
        %vm276 = vcmask 850944
        %v277 = vsel %vm276, %v270, %v275
        %v278 = vsel %vm276, %v272, %v274
        %281 = vst [vmem:[#allocation2 + $0x3c] sm:$0xff] %v277
        %282 = vst [vmem:[#allocation2 + $0x44] sm:$0xf] %v278
        %283 = vrot.lane.b32.xlu0 %v206, 103
        %v284 = vpop.permute.xlu0 %283
        %285 = vrot.lane.b32.xlu0 %v207, 103
        %v286 = vpop.permute.xlu0 %285
        %v287 = vrot.slane %v284, 4
        %v288 = vrot.slane %v286, 4
        %v289 = vsel %vm218, %v287, %v288
        %vm290 = vcmask 842752
        %v291 = vsel %vm290, %v284, %v289
        %v292 = vsel %vm290, %v286, %v288
        %295 = vst [vmem:[#allocation2 + $0x48] sm:$0xff] %v291
        %296 = vst [vmem:[#allocation2 + $0x50] sm:$0xf] %v292
        %297 = vrot.lane.b32.xlu0 %v206, 102
        %v298 = vpop.permute.xlu0 %297
        %299 = vrot.lane.b32.xlu0 %v207, 102
        %v300 = vpop.permute.xlu0 %299
        %v301 = vrot.slane %v298, 4
        %v302 = vrot.slane %v300, 4
        %v303 = vsel %vm218, %v301, %v302
        %vm304 = vcmask 834560
        %v305 = vsel %vm304, %v298, %v303
        %v306 = vsel %vm304, %v300, %v302
        %309 = vst [vmem:[#allocation2 + $0x54] sm:$0xff] %v305
        %310 = vst [vmem:[#allocation2 + $0x5c] sm:$0xf] %v306
        %311 = vrot.lane.b32.xlu0 %v206, 101
        %v312 = vpop.permute.xlu0 %311
        %313 = vrot.lane.b32.xlu0 %v207, 101
        %v314 = vpop.permute.xlu0 %313
        %v315 = vrot.slane %v312, 4
        %v316 = vrot.slane %v314, 4
        %v317 = vsel %vm218, %v315, %v316
        %vm318 = vcmask 826368
        %v319 = vsel %vm318, %v312, %v317
        %v320 = vsel %vm318, %v314, %v316
        %323 = vst [vmem:[#allocation2 + $0x60] sm:$0xff] %v319
        %324 = vst [vmem:[#allocation2 + $0x68] sm:$0xf] %v320
        %325 = vrot.lane.b32.xlu0 %v206, 100
        %v326 = vpop.permute.xlu0 %325
        %327 = vrot.lane.b32.xlu0 %v207, 100
        %v328 = vpop.permute.xlu0 %327
        %v329 = vrot.slane %v326, 4
        %v330 = vrot.slane %v328, 4
        %v331 = vsel %vm218, %v329, %v330
        %vm332 = vcmask 818176
        %v333 = vsel %vm332, %v326, %v331
        %v334 = vsel %vm332, %v328, %v330
        %337 = vst [vmem:[#allocation2 + $0x6c] sm:$0xff] %v333
        %338 = vst [vmem:[#allocation2 + $0x74] sm:$0xf] %v334
        %339 = vrot.lane.b32.xlu0 %v206, 80
        %v340 = vpop.permute.xlu0 %339
        %341 = vrot.lane.b32.xlu0 %v207, 80
        %v342 = vpop.permute.xlu0 %341
        %v343 = vrot.slane %v340, 4
        %v344 = vrot.slane %v342, 4
        %v345 = vsel %vm218, %v343, %v344
        %vm346 = vcmask 654336
        %v347 = vsel %vm346, %v340, %v345
        %v348 = vsel %vm346, %v342, %v344
        %351 = vst [vmem:[#allocation2 + $0x78] sm:$0xff] %v347
        %352 = vst [vmem:[#allocation2 + $0x80] sm:$0xf] %v348
        %353 = vrot.lane.b32.xlu0 %v206, 79
        %v354 = vpop.permute.xlu0 %353
        %355 = vrot.lane.b32.xlu0 %v207, 79
        %v356 = vpop.permute.xlu0 %355
        %v357 = vrot.slane %v354, 4
        %v358 = vrot.slane %v356, 4
        %v359 = vsel %vm218, %v357, %v358
        %vm360 = vcmask 646144
        %v361 = vsel %vm360, %v354, %v359
        %v362 = vsel %vm360, %v356, %v358
        %365 = vst [vmem:[#allocation2 + $0x84] sm:$0xff] %v361
        %366 = vst [vmem:[#allocation2 + $0x8c] sm:$0xf] %v362
        %367 = vrot.lane.b32.xlu0 %v206, 78
        %v368 = vpop.permute.xlu0 %367
        %369 = vrot.lane.b32.xlu0 %v207, 78
        %v370 = vpop.permute.xlu0 %369
        %v371 = vrot.slane %v368, 4
        %v372 = vrot.slane %v370, 4
        %v373 = vsel %vm218, %v371, %v372
        %vm374 = vcmask 637952
        %v375 = vsel %vm374, %v368, %v373
        %v376 = vsel %vm374, %v370, %v372
        %379 = vst [vmem:[#allocation2 + $0x90] sm:$0xff] %v375
        %380 = vst [vmem:[#allocation2 + $0x98] sm:$0xf] %v376
        %381 = vrot.lane.b32.xlu0 %v206, 77
        %v382 = vpop.permute.xlu0 %381
        %383 = vrot.lane.b32.xlu0 %v207, 77
        %v384 = vpop.permute.xlu0 %383
        %v385 = vrot.slane %v382, 4
        %v386 = vrot.slane %v384, 4
        %v387 = vsel %vm218, %v385, %v386
        %vm388 = vcmask 629760
        %v389 = vsel %vm388, %v382, %v387
        %v390 = vsel %vm388, %v384, %v386
        %393 = vst [vmem:[#allocation2 + $0x9c] sm:$0xff] %v389
        %394 = vst [vmem:[#allocation2 + $0xa4] sm:$0xf] %v390
        %395 = vrot.lane.b32.xlu0 %v206, 76
        %v396 = vpop.permute.xlu0 %395
        %397 = vrot.lane.b32.xlu0 %v207, 76
        %v398 = vpop.permute.xlu0 %397
        %v399 = vrot.slane %v396, 4
        %v400 = vrot.slane %v398, 4
        %v401 = vsel %vm218, %v399, %v400
        %vm402 = vcmask 621568
        %v403 = vsel %vm402, %v396, %v401
        %v404 = vsel %vm402, %v398, %v400
        %407 = vst [vmem:[#allocation2 + $0xa8] sm:$0xff] %v403
        %408 = vst [vmem:[#allocation2 + $0xb0] sm:$0xf] %v404
        %409 = vrot.lane.b32.xlu0 %v206, 56
        %v410 = vpop.permute.xlu0 %409
        %411 = vrot.lane.b32.xlu0 %v207, 56
        %v412 = vpop.permute.xlu0 %411
        %v413 = vrot.slane %v410, 4
        %v414 = vrot.slane %v412, 4
        %v415 = vsel %vm218, %v413, %v414
        %vm416 = vcmask 457728
        %v417 = vsel %vm416, %v410, %v415
        %v418 = vsel %vm416, %v412, %v414
        %421 = vst [vmem:[#allocation2 + $0xb4] sm:$0xff] %v417
        %422 = vst [vmem:[#allocation2 + $0xbc] sm:$0xf] %v418
        %423 = vrot.lane.b32.xlu0 %v206, 55
        %v424 = vpop.permute.xlu0 %423
        %425 = vrot.lane.b32.xlu0 %v207, 55
        %v426 = vpop.permute.xlu0 %425
        %v427 = vrot.slane %v424, 4
        %v428 = vrot.slane %v426, 4
        %v429 = vsel %vm218, %v427, %v428
        %vm430 = vcmask 449536
        %v431 = vsel %vm430, %v424, %v429
        %v432 = vsel %vm430, %v426, %v428
        %435 = vst [vmem:[#allocation2 + $0xc0] sm:$0xff] %v431
        %436 = vst [vmem:[#allocation2 + $0xc8] sm:$0xf] %v432
        %437 = vrot.lane.b32.xlu0 %v206, 54
        %v438 = vpop.permute.xlu0 %437
        %439 = vrot.lane.b32.xlu0 %v207, 54
        %v440 = vpop.permute.xlu0 %439
        %v441 = vrot.slane %v438, 4
        %v442 = vrot.slane %v440, 4
        %v443 = vsel %vm218, %v441, %v442
        %vm444 = vcmask 441344
        %v445 = vsel %vm444, %v438, %v443
        %v446 = vsel %vm444, %v440, %v442
        %449 = vst [vmem:[#allocation2 + $0xcc] sm:$0xff] %v445
        %450 = vst [vmem:[#allocation2 + $0xd4] sm:$0xf] %v446
        %451 = vrot.lane.b32.xlu0 %v206, 53
        %v452 = vpop.permute.xlu0 %451
        %453 = vrot.lane.b32.xlu0 %v207, 53
        %v454 = vpop.permute.xlu0 %453
        %v455 = vrot.slane %v452, 4
        %v456 = vrot.slane %v454, 4
        %v457 = vsel %vm218, %v455, %v456
        %vm458 = vcmask 433152
        %v459 = vsel %vm458, %v452, %v457
        %v460 = vsel %vm458, %v454, %v456
        %463 = vst [vmem:[#allocation2 + $0xd8] sm:$0xff] %v459
        %464 = vst [vmem:[#allocation2 + $0xe0] sm:$0xf] %v460
        %465 = vrot.lane.b32.xlu0 %v206, 52
        %v466 = vpop.permute.xlu0 %465
        %467 = vrot.lane.b32.xlu0 %v207, 52
        %v468 = vpop.permute.xlu0 %467
        %v469 = vrot.slane %v466, 4
        %v470 = vrot.slane %v468, 4
        %v471 = vsel %vm218, %v469, %v470
        %vm472 = vcmask 424960
        %v473 = vsel %vm472, %v466, %v471
        %v474 = vsel %vm472, %v468, %v470
        %477 = vst [vmem:[#allocation2 + $0xe4] sm:$0xff] %v473
        %478 = vst [vmem:[#allocation2 + $0xec] sm:$0xf] %v474
        %479 = vrot.lane.b32.xlu0 %v206, 32
        %v480 = vpop.permute.xlu0 %479
        %481 = vrot.lane.b32.xlu0 %v207, 32
        %v482 = vpop.permute.xlu0 %481
        %v483 = vrot.slane %v480, 4
        %v484 = vrot.slane %v482, 4
        %v485 = vsel %vm218, %v483, %v484
        %vm486 = vcmask 261120
        %v487 = vsel %vm486, %v480, %v485
        %v488 = vsel %vm486, %v482, %v484
        %491 = vst [vmem:[#allocation2 + $0xf0] sm:$0xff] %v487
        %492 = vst [vmem:[#allocation2 + $0xf8] sm:$0xf] %v488
        %493 = vrot.lane.b32.xlu0 %v206, 31
        %v494 = vpop.permute.xlu0 %493
        %495 = vrot.lane.b32.xlu0 %v207, 31
        %v496 = vpop.permute.xlu0 %495
        %v497 = vrot.slane %v494, 4
        %v498 = vrot.slane %v496, 4
        %v499 = vsel %vm218, %v497, %v498
        %vm500 = vcmask 252928
        %v501 = vsel %vm500, %v494, %v499
        %v502 = vsel %vm500, %v496, %v498
        %505 = vst [vmem:[#allocation2 + $0xfc] sm:$0xff] %v501
        %506 = vst [vmem:[#allocation2 + $0x104] sm:$0xf] %v502
        %507 = vrot.lane.b32.xlu0 %v206, 30
        %v508 = vpop.permute.xlu0 %507
        %509 = vrot.lane.b32.xlu0 %v207, 30
        %v510 = vpop.permute.xlu0 %509
        %v511 = vrot.slane %v508, 4
        %v512 = vrot.slane %v510, 4
        %v513 = vsel %vm218, %v511, %v512
        %vm514 = vcmask 244736
        %v515 = vsel %vm514, %v508, %v513
        %v516 = vsel %vm514, %v510, %v512
        %519 = vst [vmem:[#allocation2 + $0x108] sm:$0xff] %v515
        %520 = vst [vmem:[#allocation2 + $0x110] sm:$0xf] %v516
        %521 = vrot.lane.b32.xlu0 %v206, 29
        %v522 = vpop.permute.xlu0 %521
        %523 = vrot.lane.b32.xlu0 %v207, 29
        %v524 = vpop.permute.xlu0 %523
        %v525 = vrot.slane %v522, 4
        %v526 = vrot.slane %v524, 4
        %v527 = vsel %vm218, %v525, %v526
        %vm528 = vcmask 236544
        %v529 = vsel %vm528, %v522, %v527
        %v530 = vsel %vm528, %v524, %v526
        %533 = vst [vmem:[#allocation2 + $0x114] sm:$0xff] %v529
        %534 = vst [vmem:[#allocation2 + $0x11c] sm:$0xf] %v530
        %535 = vrot.lane.b32.xlu0 %v206, 28
        %v536 = vpop.permute.xlu0 %535
        %537 = vrot.lane.b32.xlu0 %v207, 28
        %v538 = vpop.permute.xlu0 %537
        %v539 = vrot.slane %v536, 4
        %v540 = vrot.slane %v538, 4
        %v541 = vsel %vm218, %v539, %v540
        %vm542 = vcmask 228352
        %v543 = vsel %vm542, %v536, %v541
        %v544 = vsel %vm542, %v538, %v540
        %547 = vst [vmem:[#allocation2 + $0x120] sm:$0xff] %v543
        %548 = vst [vmem:[#allocation2 + $0x128] sm:$0xf] %v544
        %v549 = vld [vmem:[%s1] sm:$0xff]
        %v550 = vld [vmem:[#allocation2] sm:$0xff]
        %v551 = vld [vmem:[#allocation2 + $0x8] sm:$0xf]
        %v552 = vld [vmem:[#allocation2 + $0xc] sm:$0xff]
        %v553 = vld [vmem:[#allocation2 + $0x14] sm:$0xf]
        %v554 = vld [vmem:[#allocation2 + $0x18] sm:$0xff]
        %v555 = vld [vmem:[#allocation2 + $0x20] sm:$0xf]
        %v556 = vld [vmem:[#allocation2 + $0x24] sm:$0xff]
        %v557 = vld [vmem:[#allocation2 + $0x2c] sm:$0xf]
        %v558 = vld [vmem:[#allocation2 + $0x30] sm:$0xff]
        %v559 = vld [vmem:[#allocation2 + $0x38] sm:$0xf]
        %v560 = vld [vmem:[#allocation2 + $0x3c] sm:$0xff]
        %v561 = vld [vmem:[#allocation2 + $0x44] sm:$0xf]
        %v562 = vld [vmem:[#allocation2 + $0x48] sm:$0xff]
        %v563 = vld [vmem:[#allocation2 + $0x50] sm:$0xf]
        %v564 = vld [vmem:[#allocation2 + $0x54] sm:$0xff]
        %v565 = vld [vmem:[#allocation2 + $0x5c] sm:$0xf]
        %v566 = vld [vmem:[#allocation2 + $0x60] sm:$0xff]
        %v567 = vld [vmem:[#allocation2 + $0x68] sm:$0xf]
        %v568 = vld [vmem:[#allocation2 + $0x6c] sm:$0xff]
        %v569 = vld [vmem:[#allocation2 + $0x74] sm:$0xf]
        %v570 = vld [vmem:[#allocation2 + $0x78] sm:$0xff]
        %v571 = vld [vmem:[#allocation2 + $0x80] sm:$0xf]
        %v572 = vld [vmem:[#allocation2 + $0x84] sm:$0xff]
        %v573 = vld [vmem:[#allocation2 + $0x8c] sm:$0xf]
        %v574 = vld [vmem:[#allocation2 + $0x90] sm:$0xff]
        %v575 = vld [vmem:[#allocation2 + $0x98] sm:$0xf]
        %v576 = vld [vmem:[#allocation2 + $0x9c] sm:$0xff]
        %v577 = vld [vmem:[#allocation2 + $0xa4] sm:$0xf]
        %v578 = vld [vmem:[#allocation2 + $0xa8] sm:$0xff]
        %v579 = vld [vmem:[#allocation2 + $0xb0] sm:$0xf]
        %v580 = vld [vmem:[#allocation2 + $0xb4] sm:$0xff]
        %v581 = vld [vmem:[#allocation2 + $0xbc] sm:$0xf]
        %v582 = vld [vmem:[#allocation2 + $0xc0] sm:$0xff]
        %v583 = vld [vmem:[#allocation2 + $0xc8] sm:$0xf]
        %v584 = vld [vmem:[#allocation2 + $0xcc] sm:$0xff]
        %v585 = vld [vmem:[#allocation2 + $0xd4] sm:$0xf]
        %v586 = vld [vmem:[#allocation2 + $0xd8] sm:$0xff]
        %v587 = vld [vmem:[#allocation2 + $0xe0] sm:$0xf]
        %v588 = vld [vmem:[#allocation2 + $0xe4] sm:$0xff]
        %v589 = vld [vmem:[#allocation2 + $0xec] sm:$0xf]
        %v590 = vld [vmem:[#allocation2 + $0xf0] sm:$0xff]
        %v591 = vld [vmem:[#allocation2 + $0xf8] sm:$0xf]
        %v592 = vld [vmem:[#allocation2 + $0xfc] sm:$0xff]
        %v593 = vld [vmem:[#allocation2 + $0x104] sm:$0xf]
        %v594 = vld [vmem:[#allocation2 + $0x108] sm:$0xff]
        %v595 = vld [vmem:[#allocation2 + $0x110] sm:$0xf]
        %v596 = vld [vmem:[#allocation2 + $0x114] sm:$0xff]
        %v597 = vld [vmem:[#allocation2 + $0x11c] sm:$0xf]
        %v598 = vld [vmem:[#allocation2 + $0x120] sm:$0xff]
        %v599 = vld [vmem:[#allocation2 + $0x128] sm:$0xf]
        %v600 = vld [vmem:[%s2] sm:$0xff]
        %602 = vset.pattern.permute.xlu0 0
        %603 = vperm.xlu0 %602, %v600
        %v604 = vpop.permute.xlu0 %603
        %v607 = vunpack.c.l.b16 %v549
        %v608 = vunpack.c.h.b16 %v549
        %v609 = vpack.c.b16 %v607, %v607
        %v610 = vpack.c.b16 %v608, %v608
        %v662 = vunpack.c.l.b16 %v550
        %v663 = vunpack.c.h.b16 %v550
        %v664 = vunpack.c.l.b16 %v551
        %v665 = vunpack.c.l.b16 %v552
        %v666 = vunpack.c.h.b16 %v552
        %v667 = vunpack.c.l.b16 %v553
        %v668 = vunpack.c.l.b16 %v554
        %v669 = vunpack.c.h.b16 %v554
        %v670 = vunpack.c.l.b16 %v555
        %v671 = vunpack.c.l.b16 %v556
        %v672 = vunpack.c.h.b16 %v556
        %v673 = vunpack.c.l.b16 %v557
        %v674 = vunpack.c.l.b16 %v558
        %v675 = vunpack.c.h.b16 %v558
        %v676 = vunpack.c.l.b16 %v559
        %v677 = vunpack.c.l.b16 %v560
        %v678 = vunpack.c.h.b16 %v560
        %v679 = vunpack.c.l.b16 %v561
        %v680 = vunpack.c.l.b16 %v562
        %v681 = vunpack.c.h.b16 %v562
        %v682 = vunpack.c.l.b16 %v563
        %v683 = vunpack.c.l.b16 %v564
        %v684 = vunpack.c.h.b16 %v564
        %v685 = vunpack.c.l.b16 %v565
        %v686 = vunpack.c.l.b16 %v566
        %v687 = vunpack.c.h.b16 %v566
        %v688 = vunpack.c.l.b16 %v567
        %v689 = vunpack.c.l.b16 %v568
        %v690 = vunpack.c.h.b16 %v568
        %v691 = vunpack.c.l.b16 %v569
        %v692 = vunpack.c.l.b16 %v570
        %v693 = vunpack.c.h.b16 %v570
        %v694 = vunpack.c.l.b16 %v571
        %v695 = vunpack.c.l.b16 %v572
        %v696 = vunpack.c.h.b16 %v572
        %v697 = vunpack.c.l.b16 %v573
        %v698 = vunpack.c.l.b16 %v574
        %v699 = vunpack.c.h.b16 %v574
        %v700 = vunpack.c.l.b16 %v575
        %v701 = vunpack.c.l.b16 %v576
        %v702 = vunpack.c.h.b16 %v576
        %v703 = vunpack.c.l.b16 %v577
        %v704 = vunpack.c.l.b16 %v578
        %v705 = vunpack.c.h.b16 %v578
        %v706 = vunpack.c.l.b16 %v579
        %v707 = vunpack.c.l.b16 %v580
        %v708 = vunpack.c.h.b16 %v580
        %v709 = vunpack.c.l.b16 %v581
        %v710 = vunpack.c.l.b16 %v582
        %v711 = vunpack.c.h.b16 %v582
        %v712 = vunpack.c.l.b16 %v583
        %v713 = vunpack.c.l.b16 %v584
        %v714 = vunpack.c.h.b16 %v584
        %v715 = vunpack.c.l.b16 %v585
        %v716 = vunpack.c.l.b16 %v586
        %v717 = vunpack.c.h.b16 %v586
        %v718 = vunpack.c.l.b16 %v587
        %v719 = vunpack.c.l.b16 %v588
        %v720 = vunpack.c.h.b16 %v588
        %v721 = vunpack.c.l.b16 %v589
        %v722 = vunpack.c.l.b16 %v590
        %v723 = vunpack.c.h.b16 %v590
        %v724 = vunpack.c.l.b16 %v591
        %v725 = vunpack.c.l.b16 %v592
        %v726 = vunpack.c.h.b16 %v592
        %v727 = vunpack.c.l.b16 %v593
        %v728 = vunpack.c.l.b16 %v594
        %v729 = vunpack.c.h.b16 %v594
        %v730 = vunpack.c.l.b16 %v595
        %v731 = vunpack.c.l.b16 %v596
        %v732 = vunpack.c.h.b16 %v596
        %v733 = vunpack.c.l.b16 %v597
        %v734 = vunpack.c.l.b16 %v598
        %v735 = vunpack.c.h.b16 %v598
        %v736 = vunpack.c.l.b16 %v599
        %v737 = vpack.c.b16 %v665, %v662
        %v738 = vpack.c.b16 %v666, %v663
        %v739 = vpack.c.b16 %v667, %v664
        %v740 = vpack.c.b16 %v671, %v668
        %v741 = vpack.c.b16 %v672, %v669
        %v742 = vpack.c.b16 %v673, %v670
        %v743 = vpack.c.b16 %v677, %v674
        %v744 = vpack.c.b16 %v678, %v675
        %v745 = vpack.c.b16 %v679, %v676
        %v746 = vpack.c.b16 %v683, %v680
        %v747 = vpack.c.b16 %v684, %v681
        %v748 = vpack.c.b16 %v685, %v682
        %v749 = vpack.c.b16 %v689, %v686
        %v750 = vpack.c.b16 %v690, %v687
        %v751 = vpack.c.b16 %v691, %v688
        %v752 = vpack.c.b16 %v695, %v692
        %v753 = vpack.c.b16 %v696, %v693
        %v754 = vpack.c.b16 %v697, %v694
        %v755 = vpack.c.b16 %v701, %v698
        %v756 = vpack.c.b16 %v702, %v699
        %v757 = vpack.c.b16 %v703, %v700
        %v758 = vpack.c.b16 %v707, %v704
        %v759 = vpack.c.b16 %v708, %v705
        %v760 = vpack.c.b16 %v709, %v706
        %v761 = vpack.c.b16 %v713, %v710
        %v762 = vpack.c.b16 %v714, %v711
        %v763 = vpack.c.b16 %v715, %v712
        %v764 = vpack.c.b16 %v719, %v716
        %v765 = vpack.c.b16 %v720, %v717
        %v766 = vpack.c.b16 %v721, %v718
        %v767 = vpack.c.b16 %v725, %v722
        %v768 = vpack.c.b16 %v726, %v723
        %v769 = vpack.c.b16 %v727, %v724
        %v770 = vpack.c.b16 %v731, %v728
        %v771 = vpack.c.b16 %v732, %v729
        %v772 = vpack.c.b16 %v733, %v730
        %v773 = vpack.c.b16 %v734, %v734
        %v774 = vpack.c.b16 %v735, %v735
        %v775 = vpack.c.b16 %v736, %v736
        %vm812 = vcmask 588800
        %v814 = vsel %vm812, %v610, 0
        %vm816 = vcmask 1043456
        %v818 = vsel %vm816, %v773, 0
        %v821 = vsel %vm816, %v774, 0
        %v824 = vsel %vm816, %v775, 0
        %826 = vmatprep.subr.bf16.mxu0 %v738
        %827 = vmatpush1.bf16.msra.mxu0 %v737
        %828 = vmatprep.subr.bf16.mxu0 %v741
        %829 = vmatpush1.bf16.msra.mxu0 %v740
        %830 = vmatprep.subr.bf16.mxu0 %v744
        %831 = vmatpush1.bf16.msra.mxu0 %v743
        %832 = vmatprep.subr.bf16.mxu0 %v747
        %833 = vmatpush1.bf16.msra.mxu0 %v746
        %834 = vmatprep.subr.bf16.mxu0 %v750
        %835 = vmatpush1.bf16.msra.mxu0 %v749
        %836 = vmatprep.subr.bf16.mxu0 %v753
        %837 = vmatpush1.bf16.msra.mxu0 %v752
        %838 = vmatprep.subr.bf16.mxu0 %v756
        %839 = vmatpush1.bf16.msra.mxu0 %v755
        %840 = vmatprep.subr.bf16.mxu0 %v759
        %841 = vmatpush1.bf16.msra.mxu0 %v758
        %842 = vmatprep.subr.bf16.mxu0 %v762
        %843 = vmatpush1.bf16.msra.mxu0 %v761
        %844 = vmatprep.subr.bf16.mxu0 %v765
        %845 = vmatpush1.bf16.msra.mxu0 %v764
        %846 = vmatprep.subr.bf16.mxu0 %v768
        %847 = vmatpush1.bf16.msra.mxu0 %v767
        %848 = vmatprep.subr.bf16.mxu0 %v771
        %849 = vmatpush1.bf16.msra.mxu0 %v770
        %850 = vmatprep.subr.bf16.mxu0 %v821
        %851 = vmatpush1.bf16.msra.mxu0 %v818
        %852 = vmatprep.subr.bf16.mxu0 0
        %853 = vmatpush1.bf16.msra.mxu0 0
        %854 = vmatprep.subr.bf16.mxu0 0
        %855 = vmatpush1.bf16.msra.mxu0 0
        %856 = vmatprep.subr.bf16.mxu0 0
        %857 = vmatpush1.bf16.msra.mxu0 0
        %858 = vmatprep.mubr.bf16.mxu0 %v814
        %859 = vmatmul.mubr.bf16.gmra.mrb[0].mxu0 %v609
        %v860 = vpop.f32.mrb[0].mxu0
        %v861 = vadd.f32 %v604, %v860
        %v862 = vpop.f32.mrb[0].mxu0
        %v863 = vadd.f32 %v604, %v862
        %v864 = vpop.f32.mrb[0].mxu0
        %v865 = vpop.f32.mrb[0].mxu0
        %866 = vdwg.mxu0
        %867 = vmatprep.subr.bf16.mxu0 0
        %868 = vmatpush1.bf16.msra.mxu0 %v739
        %869 = vmatprep.subr.bf16.mxu0 0
        %870 = vmatpush1.bf16.msra.mxu0 %v742
        %871 = vmatprep.subr.bf16.mxu0 0
        %872 = vmatpush1.bf16.msra.mxu0 %v745
        %873 = vmatprep.subr.bf16.mxu0 0
        %874 = vmatpush1.bf16.msra.mxu0 %v748
        %875 = vmatprep.subr.bf16.mxu0 0
        %876 = vmatpush1.bf16.msra.mxu0 %v751
        %877 = vmatprep.subr.bf16.mxu0 0
        %878 = vmatpush1.bf16.msra.mxu0 %v754
        %879 = vmatprep.subr.bf16.mxu0 0
        %880 = vmatpush1.bf16.msra.mxu0 %v757
        %881 = vmatprep.subr.bf16.mxu0 0
        %882 = vmatpush1.bf16.msra.mxu0 %v760
        %883 = vmatprep.subr.bf16.mxu0 0
        %884 = vmatpush1.bf16.msra.mxu0 %v763
        %885 = vmatprep.subr.bf16.mxu0 0
        %886 = vmatpush1.bf16.msra.mxu0 %v766
        %887 = vmatprep.subr.bf16.mxu0 0
        %888 = vmatpush1.bf16.msra.mxu0 %v769
        %889 = vmatprep.subr.bf16.mxu0 0
        %890 = vmatpush1.bf16.msra.mxu0 %v772
        %891 = vmatprep.subr.bf16.mxu0 0
        %892 = vmatpush1.bf16.msra.mxu0 %v824
        %893 = vmatprep.subr.bf16.mxu0 0
        %894 = vmatpush1.bf16.msra.mxu0 0
        %895 = vmatprep.subr.bf16.mxu0 0
        %896 = vmatpush1.bf16.msra.mxu0 0
        %897 = vmatprep.subr.bf16.mxu0 0
        %898 = vmatpush1.bf16.msra.mxu0 0
        %899 = vmatprep.mubr.bf16.mxu0 %v814
        %900 = vmatmul.mubr.bf16.gmra.mrb[0].mxu0 %v609
        %v901 = vpop.f32.mrb[0].mxu0
        %v902 = vadd.f32 %v604, %v901
        %v903 = vpop.f32.mrb[0].mxu0
        %v904 = vpop.f32.mrb[0].mxu0
        %v905 = vpop.f32.mrb[0].mxu0
        %906 = vdwg.mxu0
        %v907 = vpack.c.bf16 %v861, %v861
        %v908 = vpack.c.bf16 %v863, %v863
        %v909 = vpack.c.bf16 %v902, %v902
        %v913 = vunpack.c.l.b16 %v907
        %v914 = vunpack.c.l.b16 %v908
        %v915 = vunpack.c.l.b16 %v909
        %v916 = vpack.c.b16 %v914, %v913
        %v917 = vpack.c.b16 %v915, %v915
        %920 = vst [vmem:[%s204] sm:$0xff] %v916
        %921 = vst [vmem:[%s204 + $0x8] sm:$0xf] %v917
        %s922 = sand.u32 %s112, 1
        %s923 = scalar_lea.sflag [#allocation5], %s922
        %s924 = sand.u32 %s112, 1
        %s925 = smul.addr %s924, 12
        %s926 = scalar_lea.vmem [#allocation6], %s925
        // Predicated region
        $region37: #{tpu_custom_call.1} parent=31 // pred_check
          %p927 = pneg %p122
        $region38: #{tpu_custom_call.1} parent=31 // pred_check_branch
          %929 = sbr.rel (%p927) target = $region40
        $region39: #{tpu_custom_call.1} parent=31 // pred_region
          %s931 = ssub.s32 192, 192
          %932 = vsyncadd %s923, %s931
          %s933 = smul.addr %s25, 3
          %s934 = smul.addr %s24, 3
          %s935 = sadd.s32 %s933, %s934
          %s936 = smul.addr %s935, 64
          %s937 = scalar_lea.hbm %s3, %s936
          %s939 = sshll.u32 %s926, 4
          %s940 = int_to_ptr.vmem [resolvable:$true] %s939
          %942 = dma.vmem_to_hbm [thread:$0]  %s940, 192, %s937, %s923
        $region40: #{tpu_custom_call.1} parent=31 // pred_fallthru
          _
      $region32: #{tpu_custom_call.1} parent=5 // pred_fallthru
        _
      %p943 = scmp.le.s32.totalorder 2, %s15
      // Predicated region
      $region41: #{tpu_custom_call.1} parent=5 // pred_check
        %p944 = pneg %p943
      $region42: #{tpu_custom_call.1} parent=5 // pred_check_branch
        %946 = sbr.rel (%p944) target = $region44
      $region43: #{tpu_custom_call.1} parent=5 // pred_region
        %s947 = ssub.s32 %s15, 2
        // Predicated region
        $region45: #{tpu_custom_call.1} parent=43 // pred_check
          %p948 = pneg %p128
        $region46: #{tpu_custom_call.1} parent=43 // pred_check_branch
          %950 = sbr.rel (%p948) target = $region48
        $region47: #{tpu_custom_call.1} parent=43 // pred_region
          %s951 = sand.u32 %s113, 1
          %s952 = scalar_lea.sflag [#allocation5], %s951
          %s953 = sand.u32 %s113, 1
          %s954 = smul.addr %s953, 12
          %s955 = scalar_lea.vmem [#allocation6], %s954
          %956 = dma.done %s952, 192
        $region48: #{tpu_custom_call.1} parent=43 // pred_fallthru
          _
      $region44: #{tpu_custom_call.1} parent=5 // pred_fallthru
        _
    $region6: #{tpu_custom_call.1} parent=1 // loop_footer
      %s19 = sadd.s32 1, %s15
    $region7: #{tpu_custom_call.1} parent=1 // loop_footer_branch
      %14 = sbr.rel target = $region3
    $region8: #{tpu_custom_call.1} parent=1 // loop_exit
      _
    %957 = vsyncpa [#allocation4], 1
    %s958 = scalar_lea.sflag [#allocation4], 1
    %959 = vsyncpa %s958, 1
    %960 = vsyncpa [#allocation5], 1
    %s961 = scalar_lea.sflag [#allocation5], 1
    %962 = vsyncpa %s961, 1

</llo_original>
